<compile_context>
chip_gen: v6e
topology: v6e:2x2x1
jax: 0.10.0
libtpu: 0.0.40
codegen_flags: <defaults>
</compile_context>

<pallas_src>
import math

import jax
import jax.numpy as jnp
from jax.experimental import pallas as pl
from jax.experimental.pallas import tpu as pltpu


def lstm_kernel(x_ref, wx_ref, wh_ref, wp_ref, bg_ref, bp_ref, p_ref):
    """Fused LSTM recurrence + final projection.

    x_ref  : (seq*batch, input_dim)  rows ordered [t0 all batch, t1 all batch, ...]
    wx_ref : (input_dim, 4*H)        fused [W_gx | W_ix | W_fx | W_ox]
    wh_ref : (H, 4*H)                fused [W_gh | W_ih | W_fh | W_oh]
    wp_ref : (H, C_pad)              W_ph zero-padded to lane-dense width
    bg_ref : (1, 4*H)                fused gate biases
    bp_ref : (1, C_pad)              bias_p zero-padded
    p_ref  : (batch, C_pad)
    """
    batch = p_ref.shape[0]
    seq_len = x_ref.shape[0] // batch
    H = wh_ref.shape[0]

    wh = wh_ref[...]

    # One-shot input projection for ALL timesteps (bias folded in); removes
    # 4 matmuls + bias adds per step from the serial dependency chain.
    xproj = (jnp.dot(x_ref[...], wx_ref[...], preferred_element_type=jnp.float32)
             + bg_ref[...])  # (seq*batch, 4H)

    h = jnp.zeros((batch, H), jnp.float32)
    c = jnp.zeros((batch, H), jnp.float32)

    # seq_len is static -> fully unrolled recurrence, static slices only.
    for t in range(seq_len):
        gates = (xproj[t * batch:(t + 1) * batch, :]
                 + jnp.dot(h, wh, preferred_element_type=jnp.float32))  # (batch, 4H)
        g = jnp.tanh(gates[:, 0 * H:1 * H])
        i = jax.nn.sigmoid(gates[:, 1 * H:2 * H])
        f = jax.nn.sigmoid(gates[:, 2 * H:3 * H])
        o = jax.nn.sigmoid(gates[:, 3 * H:4 * H])
        c = g * i + c * f
        h = jnp.tanh(c) * o

    # Lane-dense (C_pad = multiple of 128) final projection.
    p_ref[...] = (jnp.dot(h, wp_ref[...], preferred_element_type=jnp.float32)
                  + bp_ref[...])


def xavier_normal(key, shape):
    fan_in, fan_out = shape
    std = math.sqrt(2.0 / (fan_in + fan_out))
    return std * jax.random.normal(key, shape, dtype=jnp.float32)


def init_lstm_params(key, input_dim, num_hidden, num_classes):
    keys = jax.random.split(key, 9)
    return {
        "W_gh": xavier_normal(keys[0], (num_hidden, num_hidden)),
        "W_ih": xavier_normal(keys[1], (num_hidden, num_hidden)),
        "W_fh": xavier_normal(keys[2], (num_hidden, num_hidden)),
        "W_oh": xavier_normal(keys[3], (num_hidden, num_hidden)),
        "W_gx": xavier_normal(keys[4], (input_dim, num_hidden)),
        "W_ix": xavier_normal(keys[5], (input_dim, num_hidden)),
        "W_fx": xavier_normal(keys[6], (input_dim, num_hidden)),
        "W_ox": xavier_normal(keys[7], (input_dim, num_hidden)),
        "W_ph": xavier_normal(keys[8], (num_hidden, num_classes)),
        "bias_g": jnp.zeros((num_hidden,), jnp.float32),
        "bias_i": jnp.zeros((num_hidden,), jnp.float32),
        "bias_f": jnp.zeros((num_hidden,), jnp.float32),
        "bias_o": jnp.zeros((num_hidden,), jnp.float32),
        "bias_p": jnp.zeros((num_classes,), jnp.float32),
    }


def lstm_forward(x, params):
    """x: (batch, input_dim, seq) float32 (PyTorch layout, input_dim > 1 path)."""
    batch, input_dim, seq_len = x.shape
    num_hidden = params["W_gh"].shape[0]
    num_classes = params["W_ph"].shape[1]
    c_pad = ((num_classes + 127) // 128) * 128

    # TODO(synk): the input_dim == 1 branch (x indexed as x[:, i]) is not exercised here;
    # reshape x to (batch, 1, seq) in the caller to use this same kernel.

    # Fused gate weights / biases: column order [g | i | f | o].
    wx = jnp.concatenate(
        [params["W_gx"], params["W_ix"], params["W_fx"], params["W_ox"]], axis=1)
    wh = jnp.concatenate(
        [params["W_gh"], params["W_ih"], params["W_fh"], params["W_oh"]], axis=1)
    bg = jnp.concatenate(
        [params["bias_g"], params["bias_i"], params["bias_f"], params["bias_o"]])[None, :]

    # Lane-dense projection weights (zero-padded columns -> exact result in [:, :C]).
    wp = jnp.pad(params["W_ph"], ((0, 0), (0, c_pad - num_classes)))
    bp = jnp.pad(params["bias_p"], (0, c_pad - num_classes))[None, :]

    # (batch, input_dim, seq) -> (seq, batch, input_dim) -> (seq*batch, input_dim)
    # so timestep t occupies the contiguous row block [t*batch, (t+1)*batch).
    x2d = jnp.transpose(x, (2, 0, 1)).reshape(seq_len * batch, input_dim).astype(jnp.float32)

    vmem = pl.BlockSpec(memory_space=pltpu.MemorySpace.VMEM)
    p_pad = pl.pallas_call(
        lstm_kernel,
        out_shape=jax.ShapeDtypeStruct((batch, c_pad), jnp.float32),
        in_specs=[vmem] * 6,
        out_specs=vmem,
    )(x2d, wx, wh, wp, bg, bp)
    return p_pad[:, :num_classes]


def lstm_reference(x, params):
    """Pure-JAX reference matching the PyTorch forward pass."""
    batch, input_dim, seq_len = x.shape
    num_hidden = params["W_gh"].shape[0]
    h = jnp.zeros((batch, num_hidden), jnp.float32)
    c = jnp.zeros((batch, num_hidden), jnp.float32)
    for t in range(seq_len):
        x_t = x[:, :, t]
        g = jnp.tanh(x_t @ params["W_gx"] + h @ params["W_gh"] + params["bias_g"][None, :])
        i = jax.nn.sigmoid(x_t @ params["W_ix"] + h @ params["W_ih"] + params["bias_i"][None, :])
        f = jax.nn.sigmoid(x_t @ params["W_fx"] + h @ params["W_fh"] + params["bias_f"][None, :])
        o = jax.nn.sigmoid(x_t @ params["W_ox"] + h @ params["W_oh"] + params["bias_o"][None, :])
        c = g * i + c * f
        h = jnp.tanh(c) * o
    return h @ params["W_ph"] + params["bias_p"][None, :]


if __name__ == "__main__":
    batch_size = 2
    input_dim = 4
    seq_length = 8
    num_hidden = 32
    num_classes = 10

    key = jax.random.PRNGKey(0)
    key_x, key_p = jax.random.split(key)
    x = jax.random.normal(key_x, (batch_size, input_dim, seq_length), dtype=jnp.float32)
    params = init_lstm_params(key_p, input_dim, num_hidden, num_classes)

    out = lstm_forward(x, params)
    out = jax.block_until_ready(out)

    ref = lstm_reference(x, params)
    assert out.shape == (batch_size, num_classes)
    assert jnp.allclose(out, ref, atol=1e-5, rtol=1e-5), "mismatch vs reference"

    print("KERNEL_OK")
</pallas_src>

<mosaic_0001>
module attributes {stable_mosaic.version = 11 : i64} {
  func.func @lstm_kernel(%arg0: memref<16x4xf32, #tpu.memory_space<vmem>>, %arg1: memref<4x128xf32, #tpu.memory_space<vmem>>, %arg2: memref<32x128xf32, #tpu.memory_space<vmem>>, %arg3: memref<32x128xf32, #tpu.memory_space<vmem>>, %arg4: memref<1x128xf32, #tpu.memory_space<vmem>>, %arg5: memref<1x128xf32, #tpu.memory_space<vmem>>, %arg6: memref<2x128xf32, #tpu.memory_space<vmem>>) attributes {dimension_semantics = [], scalar_prefetch = 0 : i64, scratch_operands = 0 : i64, tpu.core_type = #tpu.core_type<tc>} {
    %c0 = arith.constant 0 : index
    %c0_0 = arith.constant 0 : index
    %0 = vector.load %arg2[%c0, %c0_0] : memref<32x128xf32, #tpu.memory_space<vmem>>, vector<32x128xf32>
    %c0_1 = arith.constant 0 : index
    %c0_2 = arith.constant 0 : index
    %1 = vector.load %arg0[%c0_1, %c0_2] : memref<16x4xf32, #tpu.memory_space<vmem>>, vector<16x4xf32>
    %c0_3 = arith.constant 0 : index
    %c0_4 = arith.constant 0 : index
    %2 = vector.load %arg1[%c0_3, %c0_4] : memref<4x128xf32, #tpu.memory_space<vmem>>, vector<4x128xf32>
    %cst = arith.constant dense<0.000000e+00> : vector<16x128xf32>
    %3 = tpu.matmul %1, %2, %cst {dimension_numbers = #tpu.dot_dimension_numbers<[1], [0], [0], [1], [0, 0, 1, 1], [], []>} : vector<16x4xf32>, vector<4x128xf32>, vector<16x128xf32> -> vector<16x128xf32>
    %c0_5 = arith.constant 0 : index
    %c0_6 = arith.constant 0 : index
    %4 = vector.load %arg4[%c0_5, %c0_6] : memref<1x128xf32, #tpu.memory_space<vmem>>, vector<1x128xf32>
    %5 = vector.broadcast %4 : vector<1x128xf32> to vector<16x128xf32>
    %6 = arith.addf %3, %5 : vector<16x128xf32>
    %cst_7 = arith.constant 0.000000e+00 : f32
    %7 = vector.broadcast %cst_7 : f32 to vector<2x32xf32>
    %cst_8 = arith.constant 0.000000e+00 : f32
    %8 = vector.broadcast %cst_8 : f32 to vector<2x32xf32>
    %9 = vector.extract_strided_slice %6 {offsets = [0, 0], sizes = [2, 128], strides = [1, 1]} : vector<16x128xf32> to vector<2x128xf32>
    %cst_9 = arith.constant dense<0.000000e+00> : vector<2x128xf32>
    %10 = tpu.matmul %7, %0, %cst_9 {dimension_numbers = #tpu.dot_dimension_numbers<[1], [0], [0], [1], [0, 0, 1, 1], [], []>} : vector<2x32xf32>, vector<32x128xf32>, vector<2x128xf32> -> vector<2x128xf32>
    %11 = arith.addf %9, %10 : vector<2x128xf32>
    %12 = vector.extract_strided_slice %11 {offsets = [0, 0], sizes = [2, 32], strides = [1, 1]} : vector<2x128xf32> to vector<2x32xf32>
    %13 = math.tanh %12 : vector<2x32xf32>
    %14 = vector.extract_strided_slice %11 {offsets = [0, 32], sizes = [2, 32], strides = [1, 1]} : vector<2x128xf32> to vector<2x32xf32>
    %15 = arith.negf %14 : vector<2x32xf32>
    %16 = math.exp %15 : vector<2x32xf32>
    %cst_10 = arith.constant 1.000000e+00 : f32
    %17 = vector.broadcast %cst_10 : f32 to vector<2x32xf32>
    %18 = arith.addf %17, %16 : vector<2x32xf32>
    %19 = arith.divf %17, %18 : vector<2x32xf32>
    %20 = vector.extract_strided_slice %11 {offsets = [0, 64], sizes = [2, 32], strides = [1, 1]} : vector<2x128xf32> to vector<2x32xf32>
    %21 = arith.negf %20 : vector<2x32xf32>
    %22 = math.exp %21 : vector<2x32xf32>
    %cst_11 = arith.constant 1.000000e+00 : f32
    %23 = vector.broadcast %cst_11 : f32 to vector<2x32xf32>
    %24 = arith.addf %23, %22 : vector<2x32xf32>
    %25 = arith.divf %23, %24 : vector<2x32xf32>
    %26 = vector.extract_strided_slice %11 {offsets = [0, 96], sizes = [2, 32], strides = [1, 1]} : vector<2x128xf32> to vector<2x32xf32>
    %27 = arith.negf %26 : vector<2x32xf32>
    %28 = math.exp %27 : vector<2x32xf32>
    %cst_12 = arith.constant 1.000000e+00 : f32
    %29 = vector.broadcast %cst_12 : f32 to vector<2x32xf32>
    %30 = arith.addf %29, %28 : vector<2x32xf32>
    %31 = arith.divf %29, %30 : vector<2x32xf32>
    %32 = arith.mulf %13, %19 : vector<2x32xf32>
    %33 = arith.mulf %8, %25 : vector<2x32xf32>
    %34 = arith.addf %32, %33 : vector<2x32xf32>
    %35 = math.tanh %34 : vector<2x32xf32>
    %36 = arith.mulf %35, %31 : vector<2x32xf32>
    %37 = vector.extract_strided_slice %6 {offsets = [2, 0], sizes = [2, 128], strides = [1, 1]} : vector<16x128xf32> to vector<2x128xf32>
    %cst_13 = arith.constant dense<0.000000e+00> : vector<2x128xf32>
    %38 = tpu.matmul %36, %0, %cst_13 {dimension_numbers = #tpu.dot_dimension_numbers<[1], [0], [0], [1], [0, 0, 1, 1], [], []>} : vector<2x32xf32>, vector<32x128xf32>, vector<2x128xf32> -> vector<2x128xf32>
    %39 = arith.addf %37, %38 : vector<2x128xf32>
    %40 = vector.extract_strided_slice %39 {offsets = [0, 0], sizes = [2, 32], strides = [1, 1]} : vector<2x128xf32> to vector<2x32xf32>
    %41 = math.tanh %40 : vector<2x32xf32>
    %42 = vector.extract_strided_slice %39 {offsets = [0, 32], sizes = [2, 32], strides = [1, 1]} : vector<2x128xf32> to vector<2x32xf32>
    %43 = arith.negf %42 : vector<2x32xf32>
    %44 = math.exp %43 : vector<2x32xf32>
    %cst_14 = arith.constant 1.000000e+00 : f32
    %45 = vector.broadcast %cst_14 : f32 to vector<2x32xf32>
    %46 = arith.addf %45, %44 : vector<2x32xf32>
    %47 = arith.divf %45, %46 : vector<2x32xf32>
    %48 = vector.extract_strided_slice %39 {offsets = [0, 64], sizes = [2, 32], strides = [1, 1]} : vector<2x128xf32> to vector<2x32xf32>
    %49 = arith.negf %48 : vector<2x32xf32>
    %50 = math.exp %49 : vector<2x32xf32>
    %cst_15 = arith.constant 1.000000e+00 : f32
    %51 = vector.broadcast %cst_15 : f32 to vector<2x32xf32>
    %52 = arith.addf %51, %50 : vector<2x32xf32>
    %53 = arith.divf %51, %52 : vector<2x32xf32>
    %54 = vector.extract_strided_slice %39 {offsets = [0, 96], sizes = [2, 32], strides = [1, 1]} : vector<2x128xf32> to vector<2x32xf32>
    %55 = arith.negf %54 : vector<2x32xf32>
    %56 = math.exp %55 : vector<2x32xf32>
    %cst_16 = arith.constant 1.000000e+00 : f32
    %57 = vector.broadcast %cst_16 : f32 to vector<2x32xf32>
    %58 = arith.addf %57, %56 : vector<2x32xf32>
    %59 = arith.divf %57, %58 : vector<2x32xf32>
    %60 = arith.mulf %41, %47 : vector<2x32xf32>
    %61 = arith.mulf %34, %53 : vector<2x32xf32>
    %62 = arith.addf %60, %61 : vector<2x32xf32>
    %63 = math.tanh %62 : vector<2x32xf32>
    %64 = arith.mulf %63, %59 : vector<2x32xf32>
    %65 = vector.extract_strided_slice %6 {offsets = [4, 0], sizes = [2, 128], strides = [1, 1]} : vector<16x128xf32> to vector<2x128xf32>
    %cst_17 = arith.constant dense<0.000000e+00> : vector<2x128xf32>
    %66 = tpu.matmul %64, %0, %cst_17 {dimension_numbers = #tpu.dot_dimension_numbers<[1], [0], [0], [1], [0, 0, 1, 1], [], []>} : vector<2x32xf32>, vector<32x128xf32>, vector<2x128xf32> -> vector<2x128xf32>
    %67 = arith.addf %65, %66 : vector<2x128xf32>
    %68 = vector.extract_strided_slice %67 {offsets = [0, 0], sizes = [2, 32], strides = [1, 1]} : vector<2x128xf32> to vector<2x32xf32>
    %69 = math.tanh %68 : vector<2x32xf32>
    %70 = vector.extract_strided_slice %67 {offsets = [0, 32], sizes = [2, 32], strides = [1, 1]} : vector<2x128xf32> to vector<2x32xf32>
    %71 = arith.negf %70 : vector<2x32xf32>
    %72 = math.exp %71 : vector<2x32xf32>
    %cst_18 = arith.constant 1.000000e+00 : f32
    %73 = vector.broadcast %cst_18 : f32 to vector<2x32xf32>
    %74 = arith.addf %73, %72 : vector<2x32xf32>
    %75 = arith.divf %73, %74 : vector<2x32xf32>
    %76 = vector.extract_strided_slice %67 {offsets = [0, 64], sizes = [2, 32], strides = [1, 1]} : vector<2x128xf32> to vector<2x32xf32>
    %77 = arith.negf %76 : vector<2x32xf32>
    %78 = math.exp %77 : vector<2x32xf32>
    %cst_19 = arith.constant 1.000000e+00 : f32
    %79 = vector.broadcast %cst_19 : f32 to vector<2x32xf32>
    %80 = arith.addf %79, %78 : vector<2x32xf32>
    %81 = arith.divf %79, %80 : vector<2x32xf32>
    %82 = vector.extract_strided_slice %67 {offsets = [0, 96], sizes = [2, 32], strides = [1, 1]} : vector<2x128xf32> to vector<2x32xf32>
    %83 = arith.negf %82 : vector<2x32xf32>
    %84 = math.exp %83 : vector<2x32xf32>
    %cst_20 = arith.constant 1.000000e+00 : f32
    %85 = vector.broadcast %cst_20 : f32 to vector<2x32xf32>
    %86 = arith.addf %85, %84 : vector<2x32xf32>
    %87 = arith.divf %85, %86 : vector<2x32xf32>
    %88 = arith.mulf %69, %75 : vector<2x32xf32>
    %89 = arith.mulf %62, %81 : vector<2x32xf32>
    %90 = arith.addf %88, %89 : vector<2x32xf32>
    %91 = math.tanh %90 : vector<2x32xf32>
    %92 = arith.mulf %91, %87 : vector<2x32xf32>
    %93 = vector.extract_strided_slice %6 {offsets = [6, 0], sizes = [2, 128], strides = [1, 1]} : vector<16x128xf32> to vector<2x128xf32>
    %cst_21 = arith.constant dense<0.000000e+00> : vector<2x128xf32>
    %94 = tpu.matmul %92, %0, %cst_21 {dimension_numbers = #tpu.dot_dimension_numbers<[1], [0], [0], [1], [0, 0, 1, 1], [], []>} : vector<2x32xf32>, vector<32x128xf32>, vector<2x128xf32> -> vector<2x128xf32>
    %95 = arith.addf %93, %94 : vector<2x128xf32>
    %96 = vector.extract_strided_slice %95 {offsets = [0, 0], sizes = [2, 32], strides = [1, 1]} : vector<2x128xf32> to vector<2x32xf32>
    %97 = math.tanh %96 : vector<2x32xf32>
    %98 = vector.extract_strided_slice %95 {offsets = [0, 32], sizes = [2, 32], strides = [1, 1]} : vector<2x128xf32> to vector<2x32xf32>
    %99 = arith.negf %98 : vector<2x32xf32>
    %100 = math.exp %99 : vector<2x32xf32>
    %cst_22 = arith.constant 1.000000e+00 : f32
    %101 = vector.broadcast %cst_22 : f32 to vector<2x32xf32>
    %102 = arith.addf %101, %100 : vector<2x32xf32>
    %103 = arith.divf %101, %102 : vector<2x32xf32>
    %104 = vector.extract_strided_slice %95 {offsets = [0, 64], sizes = [2, 32], strides = [1, 1]} : vector<2x128xf32> to vector<2x32xf32>
    %105 = arith.negf %104 : vector<2x32xf32>
    %106 = math.exp %105 : vector<2x32xf32>
    %cst_23 = arith.constant 1.000000e+00 : f32
    %107 = vector.broadcast %cst_23 : f32 to vector<2x32xf32>
    %108 = arith.addf %107, %106 : vector<2x32xf32>
    %109 = arith.divf %107, %108 : vector<2x32xf32>
    %110 = vector.extract_strided_slice %95 {offsets = [0, 96], sizes = [2, 32], strides = [1, 1]} : vector<2x128xf32> to vector<2x32xf32>
    %111 = arith.negf %110 : vector<2x32xf32>
    %112 = math.exp %111 : vector<2x32xf32>
    %cst_24 = arith.constant 1.000000e+00 : f32
    %113 = vector.broadcast %cst_24 : f32 to vector<2x32xf32>
    %114 = arith.addf %113, %112 : vector<2x32xf32>
    %115 = arith.divf %113, %114 : vector<2x32xf32>
    %116 = arith.mulf %97, %103 : vector<2x32xf32>
    %117 = arith.mulf %90, %109 : vector<2x32xf32>
    %118 = arith.addf %116, %117 : vector<2x32xf32>
    %119 = math.tanh %118 : vector<2x32xf32>
    %120 = arith.mulf %119, %115 : vector<2x32xf32>
    %121 = vector.extract_strided_slice %6 {offsets = [8, 0], sizes = [2, 128], strides = [1, 1]} : vector<16x128xf32> to vector<2x128xf32>
    %cst_25 = arith.constant dense<0.000000e+00> : vector<2x128xf32>
    %122 = tpu.matmul %120, %0, %cst_25 {dimension_numbers = #tpu.dot_dimension_numbers<[1], [0], [0], [1], [0, 0, 1, 1], [], []>} : vector<2x32xf32>, vector<32x128xf32>, vector<2x128xf32> -> vector<2x128xf32>
    %123 = arith.addf %121, %122 : vector<2x128xf32>
    %124 = vector.extract_strided_slice %123 {offsets = [0, 0], sizes = [2, 32], strides = [1, 1]} : vector<2x128xf32> to vector<2x32xf32>
    %125 = math.tanh %124 : vector<2x32xf32>
    %126 = vector.extract_strided_slice %123 {offsets = [0, 32], sizes = [2, 32], strides = [1, 1]} : vector<2x128xf32> to vector<2x32xf32>
    %127 = arith.negf %126 : vector<2x32xf32>
    %128 = math.exp %127 : vector<2x32xf32>
    %cst_26 = arith.constant 1.000000e+00 : f32
    %129 = vector.broadcast %cst_26 : f32 to vector<2x32xf32>
    %130 = arith.addf %129, %128 : vector<2x32xf32>
    %131 = arith.divf %129, %130 : vector<2x32xf32>
    %132 = vector.extract_strided_slice %123 {offsets = [0, 64], sizes = [2, 32], strides = [1, 1]} : vector<2x128xf32> to vector<2x32xf32>
    %133 = arith.negf %132 : vector<2x32xf32>
    %134 = math.exp %133 : vector<2x32xf32>
    %cst_27 = arith.constant 1.000000e+00 : f32
    %135 = vector.broadcast %cst_27 : f32 to vector<2x32xf32>
    %136 = arith.addf %135, %134 : vector<2x32xf32>
    %137 = arith.divf %135, %136 : vector<2x32xf32>
    %138 = vector.extract_strided_slice %123 {offsets = [0, 96], sizes = [2, 32], strides = [1, 1]} : vector<2x128xf32> to vector<2x32xf32>
    %139 = arith.negf %138 : vector<2x32xf32>
    %140 = math.exp %139 : vector<2x32xf32>
    %cst_28 = arith.constant 1.000000e+00 : f32
    %141 = vector.broadcast %cst_28 : f32 to vector<2x32xf32>
    %142 = arith.addf %141, %140 : vector<2x32xf32>
    %143 = arith.divf %141, %142 : vector<2x32xf32>
    %144 = arith.mulf %125, %131 : vector<2x32xf32>
    %145 = arith.mulf %118, %137 : vector<2x32xf32>
    %146 = arith.addf %144, %145 : vector<2x32xf32>
    %147 = math.tanh %146 : vector<2x32xf32>
    %148 = arith.mulf %147, %143 : vector<2x32xf32>
    %149 = vector.extract_strided_slice %6 {offsets = [10, 0], sizes = [2, 128], strides = [1, 1]} : vector<16x128xf32> to vector<2x128xf32>
    %cst_29 = arith.constant dense<0.000000e+00> : vector<2x128xf32>
    %150 = tpu.matmul %148, %0, %cst_29 {dimension_numbers = #tpu.dot_dimension_numbers<[1], [0], [0], [1], [0, 0, 1, 1], [], []>} : vector<2x32xf32>, vector<32x128xf32>, vector<2x128xf32> -> vector<2x128xf32>
    %151 = arith.addf %149, %150 : vector<2x128xf32>
    %152 = vector.extract_strided_slice %151 {offsets = [0, 0], sizes = [2, 32], strides = [1, 1]} : vector<2x128xf32> to vector<2x32xf32>
    %153 = math.tanh %152 : vector<2x32xf32>
    %154 = vector.extract_strided_slice %151 {offsets = [0, 32], sizes = [2, 32], strides = [1, 1]} : vector<2x128xf32> to vector<2x32xf32>
    %155 = arith.negf %154 : vector<2x32xf32>
    %156 = math.exp %155 : vector<2x32xf32>
    %cst_30 = arith.constant 1.000000e+00 : f32
    %157 = vector.broadcast %cst_30 : f32 to vector<2x32xf32>
    %158 = arith.addf %157, %156 : vector<2x32xf32>
    %159 = arith.divf %157, %158 : vector<2x32xf32>
    %160 = vector.extract_strided_slice %151 {offsets = [0, 64], sizes = [2, 32], strides = [1, 1]} : vector<2x128xf32> to vector<2x32xf32>
    %161 = arith.negf %160 : vector<2x32xf32>
    %162 = math.exp %161 : vector<2x32xf32>
    %cst_31 = arith.constant 1.000000e+00 : f32
    %163 = vector.broadcast %cst_31 : f32 to vector<2x32xf32>
    %164 = arith.addf %163, %162 : vector<2x32xf32>
    %165 = arith.divf %163, %164 : vector<2x32xf32>
    %166 = vector.extract_strided_slice %151 {offsets = [0, 96], sizes = [2, 32], strides = [1, 1]} : vector<2x128xf32> to vector<2x32xf32>
    %167 = arith.negf %166 : vector<2x32xf32>
    %168 = math.exp %167 : vector<2x32xf32>
    %cst_32 = arith.constant 1.000000e+00 : f32
    %169 = vector.broadcast %cst_32 : f32 to vector<2x32xf32>
    %170 = arith.addf %169, %168 : vector<2x32xf32>
    %171 = arith.divf %169, %170 : vector<2x32xf32>
    %172 = arith.mulf %153, %159 : vector<2x32xf32>
    %173 = arith.mulf %146, %165 : vector<2x32xf32>
    %174 = arith.addf %172, %173 : vector<2x32xf32>
    %175 = math.tanh %174 : vector<2x32xf32>
    %176 = arith.mulf %175, %171 : vector<2x32xf32>
    %177 = vector.extract_strided_slice %6 {offsets = [12, 0], sizes = [2, 128], strides = [1, 1]} : vector<16x128xf32> to vector<2x128xf32>
    %cst_33 = arith.constant dense<0.000000e+00> : vector<2x128xf32>
    %178 = tpu.matmul %176, %0, %cst_33 {dimension_numbers = #tpu.dot_dimension_numbers<[1], [0], [0], [1], [0, 0, 1, 1], [], []>} : vector<2x32xf32>, vector<32x128xf32>, vector<2x128xf32> -> vector<2x128xf32>
    %179 = arith.addf %177, %178 : vector<2x128xf32>
    %180 = vector.extract_strided_slice %179 {offsets = [0, 0], sizes = [2, 32], strides = [1, 1]} : vector<2x128xf32> to vector<2x32xf32>
    %181 = math.tanh %180 : vector<2x32xf32>
    %182 = vector.extract_strided_slice %179 {offsets = [0, 32], sizes = [2, 32], strides = [1, 1]} : vector<2x128xf32> to vector<2x32xf32>
    %183 = arith.negf %182 : vector<2x32xf32>
    %184 = math.exp %183 : vector<2x32xf32>
    %cst_34 = arith.constant 1.000000e+00 : f32
    %185 = vector.broadcast %cst_34 : f32 to vector<2x32xf32>
    %186 = arith.addf %185, %184 : vector<2x32xf32>
    %187 = arith.divf %185, %186 : vector<2x32xf32>
    %188 = vector.extract_strided_slice %179 {offsets = [0, 64], sizes = [2, 32], strides = [1, 1]} : vector<2x128xf32> to vector<2x32xf32>
    %189 = arith.negf %188 : vector<2x32xf32>
    %190 = math.exp %189 : vector<2x32xf32>
    %cst_35 = arith.constant 1.000000e+00 : f32
    %191 = vector.broadcast %cst_35 : f32 to vector<2x32xf32>
    %192 = arith.addf %191, %190 : vector<2x32xf32>
    %193 = arith.divf %191, %192 : vector<2x32xf32>
    %194 = vector.extract_strided_slice %179 {offsets = [0, 96], sizes = [2, 32], strides = [1, 1]} : vector<2x128xf32> to vector<2x32xf32>
    %195 = arith.negf %194 : vector<2x32xf32>
    %196 = math.exp %195 : vector<2x32xf32>
    %cst_36 = arith.constant 1.000000e+00 : f32
    %197 = vector.broadcast %cst_36 : f32 to vector<2x32xf32>
    %198 = arith.addf %197, %196 : vector<2x32xf32>
    %199 = arith.divf %197, %198 : vector<2x32xf32>
    %200 = arith.mulf %181, %187 : vector<2x32xf32>
    %201 = arith.mulf %174, %193 : vector<2x32xf32>
    %202 = arith.addf %200, %201 : vector<2x32xf32>
    %203 = math.tanh %202 : vector<2x32xf32>
    %204 = arith.mulf %203, %199 : vector<2x32xf32>
    %205 = vector.extract_strided_slice %6 {offsets = [14, 0], sizes = [2, 128], strides = [1, 1]} : vector<16x128xf32> to vector<2x128xf32>
    %cst_37 = arith.constant dense<0.000000e+00> : vector<2x128xf32>
    %206 = tpu.matmul %204, %0, %cst_37 {dimension_numbers = #tpu.dot_dimension_numbers<[1], [0], [0], [1], [0, 0, 1, 1], [], []>} : vector<2x32xf32>, vector<32x128xf32>, vector<2x128xf32> -> vector<2x128xf32>
    %207 = arith.addf %205, %206 : vector<2x128xf32>
    %208 = vector.extract_strided_slice %207 {offsets = [0, 0], sizes = [2, 32], strides = [1, 1]} : vector<2x128xf32> to vector<2x32xf32>
    %209 = math.tanh %208 : vector<2x32xf32>
    %210 = vector.extract_strided_slice %207 {offsets = [0, 32], sizes = [2, 32], strides = [1, 1]} : vector<2x128xf32> to vector<2x32xf32>
    %211 = arith.negf %210 : vector<2x32xf32>
    %212 = math.exp %211 : vector<2x32xf32>
    %cst_38 = arith.constant 1.000000e+00 : f32
    %213 = vector.broadcast %cst_38 : f32 to vector<2x32xf32>
    %214 = arith.addf %213, %212 : vector<2x32xf32>
    %215 = arith.divf %213, %214 : vector<2x32xf32>
    %216 = vector.extract_strided_slice %207 {offsets = [0, 64], sizes = [2, 32], strides = [1, 1]} : vector<2x128xf32> to vector<2x32xf32>
    %217 = arith.negf %216 : vector<2x32xf32>
    %218 = math.exp %217 : vector<2x32xf32>
    %cst_39 = arith.constant 1.000000e+00 : f32
    %219 = vector.broadcast %cst_39 : f32 to vector<2x32xf32>
    %220 = arith.addf %219, %218 : vector<2x32xf32>
    %221 = arith.divf %219, %220 : vector<2x32xf32>
    %222 = vector.extract_strided_slice %207 {offsets = [0, 96], sizes = [2, 32], strides = [1, 1]} : vector<2x128xf32> to vector<2x32xf32>
    %223 = arith.negf %222 : vector<2x32xf32>
    %224 = math.exp %223 : vector<2x32xf32>
    %cst_40 = arith.constant 1.000000e+00 : f32
    %225 = vector.broadcast %cst_40 : f32 to vector<2x32xf32>
    %226 = arith.addf %225, %224 : vector<2x32xf32>
    %227 = arith.divf %225, %226 : vector<2x32xf32>
    %228 = arith.mulf %209, %215 : vector<2x32xf32>
    %229 = arith.mulf %202, %221 : vector<2x32xf32>
    %230 = arith.addf %228, %229 : vector<2x32xf32>
    %231 = math.tanh %230 : vector<2x32xf32>
    %232 = arith.mulf %231, %227 : vector<2x32xf32>
    %c0_41 = arith.constant 0 : index
    %c0_42 = arith.constant 0 : index
    %233 = vector.load %arg3[%c0_41, %c0_42] : memref<32x128xf32, #tpu.memory_space<vmem>>, vector<32x128xf32>
    %cst_43 = arith.constant dense<0.000000e+00> : vector<2x128xf32>
    %234 = tpu.matmul %232, %233, %cst_43 {dimension_numbers = #tpu.dot_dimension_numbers<[1], [0], [0], [1], [0, 0, 1, 1], [], []>} : vector<2x32xf32>, vector<32x128xf32>, vector<2x128xf32> -> vector<2x128xf32>
    %c0_44 = arith.constant 0 : index
    %c0_45 = arith.constant 0 : index
    %235 = vector.load %arg5[%c0_44, %c0_45] : memref<1x128xf32, #tpu.memory_space<vmem>>, vector<1x128xf32>
    %236 = vector.broadcast %235 : vector<1x128xf32> to vector<2x128xf32>
    %237 = arith.addf %234, %236 : vector<2x128xf32>
    %c0_46 = arith.constant 0 : index
    %c0_47 = arith.constant 0 : index
    %238 = vector.load %arg6[%c0_46, %c0_47] : memref<2x128xf32, #tpu.memory_space<vmem>>, vector<2x128xf32>
    tpu.vector_store %arg6[%c0_46, %c0_47], %237 {strides = array<i32>} : memref<2x128xf32, #tpu.memory_space<vmem>>, vector<2x128xf32>,
    return
  }
}

</mosaic_0001>

<llo_original>
// kernel: tpu_custom_call.1
$region0: #{tpu_custom_call.1}
  #allocation0 [shape = 'u32[]', space=smem, size = 0x4, offset = 0x4, fixed_abs, tag = 'smem constant byte address 0x4 - core index']
  #allocation1 [shape = 'u32[144,128]{1,0:T(1,128)}', space=vmem, size = 0x12000, scoped, tag = 'internal scratch']
  %s0 = inlined_call_operand.vmem [shape: f32[16,4], index: 0, kind: input, shape index: {}]
  %s1 = inlined_call_operand.vmem [shape: f32[4,128], index: 1, kind: input, shape index: {}]
  %s2 = inlined_call_operand.hbm [shape: f32[32,128], index: 2, kind: input, shape index: {}]
  %s3 = inlined_call_operand.hbm [shape: f32[32,128], index: 3, kind: input, shape index: {}]
  %s4 = inlined_call_operand.vmem [shape: f32[1,128], index: 4, kind: input, shape index: {}]
  %s5 = inlined_call_operand.vmem [shape: f32[1,128], index: 5, kind: input, shape index: {}]
  %s6 = inlined_call_operand.hbm [shape: f32[2,128], index: 6, kind: output, shape index: {}]
  %s7 = sld [smem:[#allocation0]]
  $region42: #{tpu_custom_call.1} parent=0
    _
  %s9 = ssub.s32 1, %s7
  %s10 = scalar_select 0, %s9, %s7
  $region1: #{tpu_custom_call.1} parent=0
    #allocation2 [shape = 'u8[16384]{0}', space=vmem, size = 0x4000, scoped, tag = 'input window, operand 2, single buffered']
    #allocation3 [shape = 's32[1]{0}', space=sflag, size = 0x4, scoped, tag = 'scoped memory for tpu_custom_call.1']
    #allocation4 [shape = 's32[1]{0}', space=sflag, size = 0x4, scoped, tag = 'scoped memory for tpu_custom_call.1']
    #allocation5 [shape = 'u8[16384]{0}', space=vmem, size = 0x4000, scoped, tag = 'input window, operand 3, single buffered']
    #allocation6 [shape = 's32[1]{0}', space=sflag, size = 0x4, scoped, tag = 'scoped memory for tpu_custom_call.1']
    #allocation7 [shape = 'u8[1024]{0}', space=vmem, size = 0x400, scoped, tag = 'output window, operand 0, single buffered']
    %11 = vsyncpa [#allocation3], 0
    %12 = vsyncpa [#allocation6], 0
    %13 = vsyncpa [#allocation4], 0
    // Predicated region
    $region2: #{tpu_custom_call.1} parent=1 // pred_check
      _
    $region3: #{tpu_custom_call.1} parent=1 // pred_check_branch
      %15 = sbr.rel (0) target = $region5
    $region4: #{tpu_custom_call.1} parent=1 // pred_region
      _
    $region5: #{tpu_custom_call.1} parent=1 // pred_fallthru
      _
    // Predicated region
    $region6: #{tpu_custom_call.1} parent=1 // pred_check
      _
    $region7: #{tpu_custom_call.1} parent=1 // pred_check_branch
      %17 = sbr.rel (0) target = $region9
    $region8: #{tpu_custom_call.1} parent=1 // pred_region
      _
    $region9: #{tpu_custom_call.1} parent=1 // pred_fallthru
      _
    // Predicated region
    $region10: #{tpu_custom_call.1} parent=1 // pred_check
      _
    $region11: #{tpu_custom_call.1} parent=1 // pred_check_branch
      %19 = sbr.rel (0) target = $region13
    $region12: #{tpu_custom_call.1} parent=1 // pred_region
      %s21 = ssub.s32 512, 512
      %22 = vsyncadd [#allocation3], %s21
      %s23 = sshll.u32 [#allocation2], 4
      %s24 = int_to_ptr.vmem [resolvable:$true] %s23
      %29 = dma.hbm_to_vmem [thread:$0]  %s2, 512, %s24, [#allocation3], 128, 128, 8
    $region13: #{tpu_custom_call.1} parent=1 // pred_fallthru
      _
    // Predicated region
    $region14: #{tpu_custom_call.1} parent=1 // pred_check
      _
    $region15: #{tpu_custom_call.1} parent=1 // pred_check_branch
      %31 = sbr.rel (0) target = $region17
    $region16: #{tpu_custom_call.1} parent=1 // pred_region
      %s33 = ssub.s32 512, 512
      %34 = vsyncadd [#allocation6], %s33
      %s35 = sshll.u32 [#allocation5], 4
      %s36 = int_to_ptr.vmem [resolvable:$true] %s35
      %41 = dma.hbm_to_vmem [thread:$0]  %s3, 512, %s36, [#allocation6], 128, 128, 8
    $region17: #{tpu_custom_call.1} parent=1 // pred_fallthru
      _
    // Predicated region
    $region18: #{tpu_custom_call.1} parent=1 // pred_check
      _
    $region19: #{tpu_custom_call.1} parent=1 // pred_check_branch
      %43 = sbr.rel (0) target = $region21
    $region20: #{tpu_custom_call.1} parent=1 // pred_region
      _
    $region21: #{tpu_custom_call.1} parent=1 // pred_fallthru
      _
    // Predicated region
    $region22: #{tpu_custom_call.1} parent=1 // pred_check
      _
    $region23: #{tpu_custom_call.1} parent=1 // pred_check_branch
      %45 = sbr.rel (0) target = $region25
    $region24: #{tpu_custom_call.1} parent=1 // pred_region
      _
    $region25: #{tpu_custom_call.1} parent=1 // pred_fallthru
      _
    // Predicated region
    $region26: #{tpu_custom_call.1} parent=1 // pred_check
      _
    $region27: #{tpu_custom_call.1} parent=1 // pred_check_branch
      %47 = sbr.rel (0) target = $region29
    $region28: #{tpu_custom_call.1} parent=1 // pred_region
      %48 = dma.done [#allocation3], 512
    $region29: #{tpu_custom_call.1} parent=1 // pred_fallthru
      _
    // Predicated region
    $region30: #{tpu_custom_call.1} parent=1 // pred_check
      _
    $region31: #{tpu_custom_call.1} parent=1 // pred_check_branch
      %50 = sbr.rel (0) target = $region33
    $region32: #{tpu_custom_call.1} parent=1 // pred_region
      %51 = dma.done [#allocation6], 512
    $region33: #{tpu_custom_call.1} parent=1 // pred_fallthru
      _
    %v52 = vld [vmem:[#allocation2] sm:$0xff]
    %v53 = vld [vmem:[#allocation2 + $0x8] sm:$0xff]
    %v54 = vld [vmem:[#allocation2 + $0x10] sm:$0xff]
    %v55 = vld [vmem:[#allocation2 + $0x18] sm:$0xff]
    %v56 = vld [vmem:[%s0] sm:$0xff]
    %v57 = vld [vmem:[%s0 + $0x8] sm:$0xff]
    %v58 = vld [vmem:[%s1] sm:$0xf]
    %v59 = vld [vmem:[%s4] sm:$0x1]
    %v61 = vlaneseq
    %v62 = vshrl.u32 %v61, 7
    %v63 = vsub.s32 0, %v62
    %v64 = vrot.slane %v59, %v63
    %vm66 = vcmask 31744
    %v68 = vsel %vm66, %v56, 0
    %v71 = vsel %vm66, %v57, 0
    %vm73 = vcmask 1043456
    %v75 = vsel %vm73, %v58, 0
    %77 = vmatprep.subr.mxu0 0.0
    %78 = vmatpush1.msra.mxu0 0.0
    %79 = vmatprep.subr.mxu0 0.0
    %80 = vmatpush1.msra.mxu0 0.0
    %81 = vmatprep.subr.mxu0 0.0
    %82 = vmatpush1.msra.mxu0 0.0
    %83 = vmatprep.subr.mxu0 0.0
    %84 = vmatpush1.msra.mxu0 0.0
    %85 = vmatprep.subr.mxu0 0.0
    %86 = vmatpush1.msra.mxu0 0.0
    %87 = vmatprep.subr.mxu0 0.0
    %88 = vmatpush1.msra.mxu0 0.0
    %89 = vmatprep.subr.mxu0 0.0
    %90 = vmatpush1.msra.mxu0 0.0
    %91 = vmatprep.subr.mxu0 0.0
    %92 = vmatpush1.msra.mxu0 0.0
    %93 = vmatprep.subr.mxu0 0.0
    %94 = vmatpush1.msra.mxu0 0.0
    %95 = vmatprep.subr.mxu0 0.0
    %96 = vmatpush1.msra.mxu0 0.0
    %97 = vmatprep.subr.mxu0 0.0
    %98 = vmatpush1.msra.mxu0 0.0
    %99 = vmatprep.subr.mxu0 0.0
    %100 = vmatpush1.msra.mxu0 0.0
    %101 = vmatprep.subr.mxu0 0.0
    %102 = vmatpush1.msra.mxu0 0.0
    %103 = vmatprep.subr.mxu0 0.0
    %104 = vmatpush1.msra.mxu0 0.0
    %105 = vmatprep.subr.mxu0 0.0
    %106 = vmatpush1.msra.mxu0 0.0
    %107 = vmatprep.subr.mxu0 0.0
    %108 = vmatpush1.msra.mxu0 %v75
    %109 = vmatprep.subr.mxu0 0.0
    %110 = vmatpush2.msra.mxu0 0.0
    %111 = vmatprep.subr.mxu0 0.0
    %112 = vmatpush2.msra.mxu0 0.0
    %113 = vmatprep.subr.mxu0 0.0
    %114 = vmatpush2.msra.mxu0 0.0
    %115 = vmatprep.subr.mxu0 0.0
    %116 = vmatpush2.msra.mxu0 0.0
    %117 = vmatprep.subr.mxu0 0.0
    %118 = vmatpush2.msra.mxu0 0.0
    %119 = vmatprep.subr.mxu0 0.0
    %120 = vmatpush2.msra.mxu0 0.0
    %121 = vmatprep.subr.mxu0 0.0
    %122 = vmatpush2.msra.mxu0 0.0
    %123 = vmatprep.subr.mxu0 0.0
    %124 = vmatpush2.msra.mxu0 0.0
    %125 = vmatprep.subr.mxu0 0.0
    %126 = vmatpush2.msra.mxu0 0.0
    %127 = vmatprep.subr.mxu0 0.0
    %128 = vmatpush2.msra.mxu0 0.0
    %129 = vmatprep.subr.mxu0 0.0
    %130 = vmatpush2.msra.mxu0 0.0
    %131 = vmatprep.subr.mxu0 0.0
    %132 = vmatpush2.msra.mxu0 0.0
    %133 = vmatprep.subr.mxu0 0.0
    %134 = vmatpush2.msra.mxu0 0.0
    %135 = vmatprep.subr.mxu0 0.0
    %136 = vmatpush2.msra.mxu0 0.0
    %137 = vmatprep.subr.mxu0 0.0
    %138 = vmatpush2.msra.mxu0 0.0
    %139 = vmatprep.subr.mxu0 0.0
    %140 = vmatpush2.msra.mxu0 0.0
    %141 = vmatprep.mubr.f32.mxu0 0.0
    %142 = vmatmul.mubr.f32.gmra.mxu0 %v68
    %v143 = vpop.f32.mrf.mxu0
    %v144 = vadd.f32 %v64, %v143
    %v145 = vpop.f32.mrf.mxu0
    %146 = vmatprep.mubr.f32.mxu0 0.0
    %147 = vmatmul.mubr.f32.gmra.mxu0 %v71
    %v148 = vpop.f32.mrf.mxu0
    %v149 = vadd.f32 %v64, %v148
    %v150 = vpop.f32.mrf.mxu0
    %151 = vdwg.mxu0
    %vm152 = vcmask 261120
    %v154 = vsel %vm152, 0.0, 0
    %156 = vmatprep.subr.mxu0 0.0
    %157 = vmatpush1.msra.mxu0 0.0
    %158 = vmatprep.subr.mxu0 0.0
    %159 = vmatpush1.msra.mxu0 0.0
    %160 = vmatprep.subr.mxu0 0.0
    %161 = vmatpush1.msra.mxu0 0.0
    %162 = vmatprep.subr.mxu0 0.0
    %163 = vmatpush1.msra.mxu0 0.0
    %164 = vmatprep.subr.mxu0 0.0
    %165 = vmatpush1.msra.mxu0 0.0
    %166 = vmatprep.subr.mxu0 0.0
    %167 = vmatpush1.msra.mxu0 0.0
    %168 = vmatprep.subr.mxu0 0.0
    %169 = vmatpush1.msra.mxu0 0.0
    %170 = vmatprep.subr.mxu0 0.0
    %171 = vmatpush1.msra.mxu0 0.0
    %172 = vmatprep.subr.mxu0 0.0
    %173 = vmatpush1.msra.mxu0 0.0
    %174 = vmatprep.subr.mxu0 0.0
    %175 = vmatpush1.msra.mxu0 0.0
    %176 = vmatprep.subr.mxu0 0.0
    %177 = vmatpush1.msra.mxu0 0.0
    %178 = vmatprep.subr.mxu0 0.0
    %179 = vmatpush1.msra.mxu0 0.0
    %180 = vmatprep.subr.mxu0 0.0
    %181 = vmatpush1.msra.mxu0 %v55
    %182 = vmatprep.subr.mxu0 0.0
    %183 = vmatpush1.msra.mxu0 %v54
    %184 = vmatprep.subr.mxu0 0.0
    %185 = vmatpush1.msra.mxu0 %v53
    %186 = vmatprep.subr.mxu0 0.0
    %187 = vmatpush1.msra.mxu0 %v52
    %188 = vmatprep.subr.mxu0 0.0
    %189 = vmatpush2.msra.mxu0 0.0
    %190 = vmatprep.subr.mxu0 0.0
    %191 = vmatpush2.msra.mxu0 0.0
    %192 = vmatprep.subr.mxu0 0.0
    %193 = vmatpush2.msra.mxu0 0.0
    %194 = vmatprep.subr.mxu0 0.0
    %195 = vmatpush2.msra.mxu0 0.0
    %196 = vmatprep.subr.mxu0 0.0
    %197 = vmatpush2.msra.mxu0 0.0
    %198 = vmatprep.subr.mxu0 0.0
    %199 = vmatpush2.msra.mxu0 0.0
    %200 = vmatprep.subr.mxu0 0.0
    %201 = vmatpush2.msra.mxu0 0.0
    %202 = vmatprep.subr.mxu0 0.0
    %203 = vmatpush2.msra.mxu0 0.0
    %204 = vmatprep.subr.mxu0 0.0
    %205 = vmatpush2.msra.mxu0 0.0
    %206 = vmatprep.subr.mxu0 0.0
    %207 = vmatpush2.msra.mxu0 0.0
    %208 = vmatprep.subr.mxu0 0.0
    %209 = vmatpush2.msra.mxu0 0.0
    %210 = vmatprep.subr.mxu0 0.0
    %211 = vmatpush2.msra.mxu0 0.0
    %212 = vmatprep.subr.mxu0 0.0
    %213 = vmatpush2.msra.mxu0 0.0
    %214 = vmatprep.subr.mxu0 0.0
    %215 = vmatpush2.msra.mxu0 0.0
    %216 = vmatprep.subr.mxu0 0.0
    %217 = vmatpush2.msra.mxu0 0.0
    %218 = vmatprep.subr.mxu0 0.0
    %219 = vmatpush2.msra.mxu0 0.0
    %220 = vmatprep.mubr.f32.mxu0 0.0
    %221 = vmatmul.mubr.f32.gmra.mxu0 %v154
    %v222 = vpop.f32.mrf.mxu0
    %v223 = vadd.f32 0.0, %v222
    %v224 = vpop.f32.mrf.mxu0
    %225 = vdwg.mxu0
    %v226 = vadd.f32 %v144, %v223
    %v227 = vtanh.pop %v226
    %v228 = vxor.u32 %v226, 2147483648
    %v229 = vmul.f32 %v228, 1.442695
    %v230 = vpow.pop %v229
    %v231 = vadd.f32 %v230, 1.0
    %v232 = vrcp.pop %v231
    %v233 = vmul.f32 1.0, %v232
    %235 = vrot.lane.b32.xlu0 %v233, 96
    %v236 = vpop.permute.xlu0 %235
    %v238 = vmul.f32 %v227, %v236
    %v239 = vmul.f32 %v233, 0.0
    %241 = vrot.lane.b32.xlu0 %v239, 64
    %v242 = vpop.permute.xlu0 %241
    %v244 = vadd.f32 %v238, %v242
    %v245 = vtanh.pop %v244
    %246 = vrot.lane.b32.xlu0 %v233, 32
    %v247 = vpop.permute.xlu0 %246
    %v249 = vmul.f32 %v245, %v247
    %v251 = vsel %vm152, %v249, 0
    %253 = vmatprep.subr.mxu0 0.0
    %254 = vmatpush1.msra.mxu0 0.0
    %255 = vmatprep.subr.mxu0 0.0
    %256 = vmatpush1.msra.mxu0 0.0
    %257 = vmatprep.subr.mxu0 0.0
    %258 = vmatpush1.msra.mxu0 0.0
    %259 = vmatprep.subr.mxu0 0.0
    %260 = vmatpush1.msra.mxu0 0.0
    %261 = vmatprep.subr.mxu0 0.0
    %262 = vmatpush1.msra.mxu0 0.0
    %263 = vmatprep.subr.mxu0 0.0
    %264 = vmatpush1.msra.mxu0 0.0
    %265 = vmatprep.subr.mxu0 0.0
    %266 = vmatpush1.msra.mxu0 0.0
    %267 = vmatprep.subr.mxu0 0.0
    %268 = vmatpush1.msra.mxu0 0.0
    %269 = vmatprep.subr.mxu0 0.0
    %270 = vmatpush1.msra.mxu0 0.0
    %271 = vmatprep.subr.mxu0 0.0
    %272 = vmatpush1.msra.mxu0 0.0
    %273 = vmatprep.subr.mxu0 0.0
    %274 = vmatpush1.msra.mxu0 0.0
    %275 = vmatprep.subr.mxu0 0.0
    %276 = vmatpush1.msra.mxu0 0.0
    %277 = vmatprep.subr.mxu0 0.0
    %278 = vmatpush1.msra.mxu0 %v55
    %279 = vmatprep.subr.mxu0 0.0
    %280 = vmatpush1.msra.mxu0 %v54
    %281 = vmatprep.subr.mxu0 0.0
    %282 = vmatpush1.msra.mxu0 %v53
    %283 = vmatprep.subr.mxu0 0.0
    %284 = vmatpush1.msra.mxu0 %v52
    %285 = vmatprep.subr.mxu0 0.0
    %286 = vmatpush2.msra.mxu0 0.0
    %287 = vmatprep.subr.mxu0 0.0
    %288 = vmatpush2.msra.mxu0 0.0
    %289 = vmatprep.subr.mxu0 0.0
    %290 = vmatpush2.msra.mxu0 0.0
    %291 = vmatprep.subr.mxu0 0.0
    %292 = vmatpush2.msra.mxu0 0.0
    %293 = vmatprep.subr.mxu0 0.0
    %294 = vmatpush2.msra.mxu0 0.0
    %295 = vmatprep.subr.mxu0 0.0
    %296 = vmatpush2.msra.mxu0 0.0
    %297 = vmatprep.subr.mxu0 0.0
    %298 = vmatpush2.msra.mxu0 0.0
    %299 = vmatprep.subr.mxu0 0.0
    %300 = vmatpush2.msra.mxu0 0.0
    %301 = vmatprep.subr.mxu0 0.0
    %302 = vmatpush2.msra.mxu0 0.0
    %303 = vmatprep.subr.mxu0 0.0
    %304 = vmatpush2.msra.mxu0 0.0
    %305 = vmatprep.subr.mxu0 0.0
    %306 = vmatpush2.msra.mxu0 0.0
    %307 = vmatprep.subr.mxu0 0.0
    %308 = vmatpush2.msra.mxu0 0.0
    %309 = vmatprep.subr.mxu0 0.0
    %310 = vmatpush2.msra.mxu0 0.0
    %311 = vmatprep.subr.mxu0 0.0
    %312 = vmatpush2.msra.mxu0 0.0
    %313 = vmatprep.subr.mxu0 0.0
    %314 = vmatpush2.msra.mxu0 0.0
    %315 = vmatprep.subr.mxu0 0.0
    %316 = vmatpush2.msra.mxu0 0.0
    %317 = vmatprep.mubr.f32.mxu0 0.0
    %318 = vmatmul.mubr.f32.gmra.mxu0 %v251
    %v319 = vpop.f32.mrf.mxu0
    %v320 = vadd.f32 0.0, %v319
    %v321 = vpop.f32.mrf.mxu0
    %322 = vdwg.mxu0
    %v324 = vrot.slane %v320, 6
    %v326 = vadd.f32 %v144, %v324
    %v327 = vtanh.pop %v326
    %v328 = vxor.u32 %v326, 2147483648
    %v329 = vmul.f32 %v328, 1.442695
    %v330 = vpow.pop %v329
    %v331 = vadd.f32 %v330, 1.0
    %v332 = vrcp.pop %v331
    %v333 = vmul.f32 1.0, %v332
    %335 = vrot.lane.b32.xlu0 %v333, 96
    %v336 = vpop.permute.xlu0 %335
    %v338 = vmul.f32 %v327, %v336
    %v339 = vrot.slane %v333, 2
    %340 = vrot.lane.b32.xlu0 %v339, 64
    %v341 = vpop.permute.xlu0 %340
    %v343 = vmul.f32 %v244, %v341
    %v345 = vrot.slane %v343, 6
    %v347 = vadd.f32 %v338, %v345
    %v348 = vtanh.pop %v347
    %349 = vrot.lane.b32.xlu0 %v333, 32
    %v350 = vpop.permute.xlu0 %349
    %v352 = vmul.f32 %v348, %v350
    %v354 = vrot.slane %v352, 2
    %v355 = vsel %vm152, %v354, 0
    %357 = vmatprep.subr.mxu0 0.0
    %358 = vmatpush1.msra.mxu0 0.0
    %359 = vmatprep.subr.mxu0 0.0
    %360 = vmatpush1.msra.mxu0 0.0
    %361 = vmatprep.subr.mxu0 0.0
    %362 = vmatpush1.msra.mxu0 0.0
    %363 = vmatprep.subr.mxu0 0.0
    %364 = vmatpush1.msra.mxu0 0.0
    %365 = vmatprep.subr.mxu0 0.0
    %366 = vmatpush1.msra.mxu0 0.0
    %367 = vmatprep.subr.mxu0 0.0
    %368 = vmatpush1.msra.mxu0 0.0
    %369 = vmatprep.subr.mxu0 0.0
    %370 = vmatpush1.msra.mxu0 0.0
    %371 = vmatprep.subr.mxu0 0.0
    %372 = vmatpush1.msra.mxu0 0.0
    %373 = vmatprep.subr.mxu0 0.0
    %374 = vmatpush1.msra.mxu0 0.0
    %375 = vmatprep.subr.mxu0 0.0
    %376 = vmatpush1.msra.mxu0 0.0
    %377 = vmatprep.subr.mxu0 0.0
    %378 = vmatpush1.msra.mxu0 0.0
    %379 = vmatprep.subr.mxu0 0.0
    %380 = vmatpush1.msra.mxu0 0.0
    %381 = vmatprep.subr.mxu0 0.0
    %382 = vmatpush1.msra.mxu0 %v55
    %383 = vmatprep.subr.mxu0 0.0
    %384 = vmatpush1.msra.mxu0 %v54
    %385 = vmatprep.subr.mxu0 0.0
    %386 = vmatpush1.msra.mxu0 %v53
    %387 = vmatprep.subr.mxu0 0.0
    %388 = vmatpush1.msra.mxu0 %v52
    %389 = vmatprep.subr.mxu0 0.0
    %390 = vmatpush2.msra.mxu0 0.0
    %391 = vmatprep.subr.mxu0 0.0
    %392 = vmatpush2.msra.mxu0 0.0
    %393 = vmatprep.subr.mxu0 0.0
    %394 = vmatpush2.msra.mxu0 0.0
    %395 = vmatprep.subr.mxu0 0.0
    %396 = vmatpush2.msra.mxu0 0.0
    %397 = vmatprep.subr.mxu0 0.0
    %398 = vmatpush2.msra.mxu0 0.0
    %399 = vmatprep.subr.mxu0 0.0
    %400 = vmatpush2.msra.mxu0 0.0
    %401 = vmatprep.subr.mxu0 0.0
    %402 = vmatpush2.msra.mxu0 0.0
    %403 = vmatprep.subr.mxu0 0.0
    %404 = vmatpush2.msra.mxu0 0.0
    %405 = vmatprep.subr.mxu0 0.0
    %406 = vmatpush2.msra.mxu0 0.0
    %407 = vmatprep.subr.mxu0 0.0
    %408 = vmatpush2.msra.mxu0 0.0
    %409 = vmatprep.subr.mxu0 0.0
    %410 = vmatpush2.msra.mxu0 0.0
    %411 = vmatprep.subr.mxu0 0.0
    %412 = vmatpush2.msra.mxu0 0.0
    %413 = vmatprep.subr.mxu0 0.0
    %414 = vmatpush2.msra.mxu0 0.0
    %415 = vmatprep.subr.mxu0 0.0
    %416 = vmatpush2.msra.mxu0 0.0
    %417 = vmatprep.subr.mxu0 0.0
    %418 = vmatpush2.msra.mxu0 0.0
    %419 = vmatprep.subr.mxu0 0.0
    %420 = vmatpush2.msra.mxu0 0.0
    %421 = vmatprep.mubr.f32.mxu0 0.0
    %422 = vmatmul.mubr.f32.gmra.mxu0 %v355
    %v423 = vpop.f32.mrf.mxu0
    %v424 = vadd.f32 0.0, %v423
    %v425 = vpop.f32.mrf.mxu0
    %426 = vdwg.mxu0
    %v428 = vrot.slane %v424, 4
    %v430 = vadd.f32 %v144, %v428
    %v431 = vtanh.pop %v430
    %v432 = vxor.u32 %v430, 2147483648
    %v433 = vmul.f32 %v432, 1.442695
    %v434 = vpow.pop %v433
    %v435 = vadd.f32 %v434, 1.0
    %v436 = vrcp.pop %v435
    %v437 = vmul.f32 1.0, %v436
    %439 = vrot.lane.b32.xlu0 %v437, 96
    %v440 = vpop.permute.xlu0 %439
    %v442 = vmul.f32 %v431, %v440
    %v443 = vrot.slane %v437, 2
    %444 = vrot.lane.b32.xlu0 %v443, 64
    %v445 = vpop.permute.xlu0 %444
    %v447 = vmul.f32 %v347, %v445
    %v449 = vrot.slane %v447, 6
    %v451 = vadd.f32 %v442, %v449
    %v452 = vtanh.pop %v451
    %453 = vrot.lane.b32.xlu0 %v437, 32
    %v454 = vpop.permute.xlu0 %453
    %v456 = vmul.f32 %v452, %v454
    %v458 = vrot.slane %v456, 4
    %v459 = vsel %vm152, %v458, 0
    %461 = vmatprep.subr.mxu0 0.0
    %462 = vmatpush1.msra.mxu0 0.0
    %463 = vmatprep.subr.mxu0 0.0
    %464 = vmatpush1.msra.mxu0 0.0
    %465 = vmatprep.subr.mxu0 0.0
    %466 = vmatpush1.msra.mxu0 0.0
    %467 = vmatprep.subr.mxu0 0.0
    %468 = vmatpush1.msra.mxu0 0.0
    %469 = vmatprep.subr.mxu0 0.0
    %470 = vmatpush1.msra.mxu0 0.0
    %471 = vmatprep.subr.mxu0 0.0
    %472 = vmatpush1.msra.mxu0 0.0
    %473 = vmatprep.subr.mxu0 0.0
    %474 = vmatpush1.msra.mxu0 0.0
    %475 = vmatprep.subr.mxu0 0.0
    %476 = vmatpush1.msra.mxu0 0.0
    %477 = vmatprep.subr.mxu0 0.0
    %478 = vmatpush1.msra.mxu0 0.0
    %479 = vmatprep.subr.mxu0 0.0
    %480 = vmatpush1.msra.mxu0 0.0
    %481 = vmatprep.subr.mxu0 0.0
    %482 = vmatpush1.msra.mxu0 0.0
    %483 = vmatprep.subr.mxu0 0.0
    %484 = vmatpush1.msra.mxu0 0.0
    %485 = vmatprep.subr.mxu0 0.0
    %486 = vmatpush1.msra.mxu0 %v55
    %487 = vmatprep.subr.mxu0 0.0
    %488 = vmatpush1.msra.mxu0 %v54
    %489 = vmatprep.subr.mxu0 0.0
    %490 = vmatpush1.msra.mxu0 %v53
    %491 = vmatprep.subr.mxu0 0.0
    %492 = vmatpush1.msra.mxu0 %v52
    %493 = vmatprep.subr.mxu0 0.0
    %494 = vmatpush2.msra.mxu0 0.0
    %495 = vmatprep.subr.mxu0 0.0
    %496 = vmatpush2.msra.mxu0 0.0
    %497 = vmatprep.subr.mxu0 0.0
    %498 = vmatpush2.msra.mxu0 0.0
    %499 = vmatprep.subr.mxu0 0.0
    %500 = vmatpush2.msra.mxu0 0.0
    %501 = vmatprep.subr.mxu0 0.0
    %502 = vmatpush2.msra.mxu0 0.0
    %503 = vmatprep.subr.mxu0 0.0
    %504 = vmatpush2.msra.mxu0 0.0
    %505 = vmatprep.subr.mxu0 0.0
    %506 = vmatpush2.msra.mxu0 0.0
    %507 = vmatprep.subr.mxu0 0.0
    %508 = vmatpush2.msra.mxu0 0.0
    %509 = vmatprep.subr.mxu0 0.0
    %510 = vmatpush2.msra.mxu0 0.0
    %511 = vmatprep.subr.mxu0 0.0
    %512 = vmatpush2.msra.mxu0 0.0
    %513 = vmatprep.subr.mxu0 0.0
    %514 = vmatpush2.msra.mxu0 0.0
    %515 = vmatprep.subr.mxu0 0.0
    %516 = vmatpush2.msra.mxu0 0.0
    %517 = vmatprep.subr.mxu0 0.0
    %518 = vmatpush2.msra.mxu0 0.0
    %519 = vmatprep.subr.mxu0 0.0
    %520 = vmatpush2.msra.mxu0 0.0
    %521 = vmatprep.subr.mxu0 0.0
    %522 = vmatpush2.msra.mxu0 0.0
    %523 = vmatprep.subr.mxu0 0.0
    %524 = vmatpush2.msra.mxu0 0.0
    %525 = vmatprep.mubr.f32.mxu0 0.0
    %526 = vmatmul.mubr.f32.gmra.mxu0 %v459
    %v527 = vpop.f32.mrf.mxu0
    %v528 = vadd.f32 0.0, %v527
    %v529 = vpop.f32.mrf.mxu0
    %530 = vdwg.mxu0
    %v532 = vrot.slane %v528, 2
    %v534 = vadd.f32 %v144, %v532
    %v535 = vtanh.pop %v534
    %v536 = vxor.u32 %v534, 2147483648
    %v537 = vmul.f32 %v536, 1.442695
    %v538 = vpow.pop %v537
    %v539 = vadd.f32 %v538, 1.0
    %v540 = vrcp.pop %v539
    %v541 = vmul.f32 1.0, %v540
    %543 = vrot.lane.b32.xlu0 %v541, 96
    %v544 = vpop.permute.xlu0 %543
    %v546 = vmul.f32 %v535, %v544
    %v547 = vrot.slane %v541, 2
    %548 = vrot.lane.b32.xlu0 %v547, 64
    %v549 = vpop.permute.xlu0 %548
    %v551 = vmul.f32 %v451, %v549
    %v553 = vrot.slane %v551, 6
    %v555 = vadd.f32 %v546, %v553
    %v556 = vtanh.pop %v555
    %557 = vrot.lane.b32.xlu0 %v541, 32
    %v558 = vpop.permute.xlu0 %557
    %v560 = vmul.f32 %v556, %v558
    %v562 = vrot.slane %v560, 6
    %v563 = vsel %vm152, %v562, 0
    %565 = vmatprep.subr.mxu0 0.0
    %566 = vmatpush1.msra.mxu0 0.0
    %567 = vmatprep.subr.mxu0 0.0
    %568 = vmatpush1.msra.mxu0 0.0
    %569 = vmatprep.subr.mxu0 0.0
    %570 = vmatpush1.msra.mxu0 0.0
    %571 = vmatprep.subr.mxu0 0.0
    %572 = vmatpush1.msra.mxu0 0.0
    %573 = vmatprep.subr.mxu0 0.0
    %574 = vmatpush1.msra.mxu0 0.0
    %575 = vmatprep.subr.mxu0 0.0
    %576 = vmatpush1.msra.mxu0 0.0
    %577 = vmatprep.subr.mxu0 0.0
    %578 = vmatpush1.msra.mxu0 0.0
    %579 = vmatprep.subr.mxu0 0.0
    %580 = vmatpush1.msra.mxu0 0.0
    %581 = vmatprep.subr.mxu0 0.0
    %582 = vmatpush1.msra.mxu0 0.0
    %583 = vmatprep.subr.mxu0 0.0
    %584 = vmatpush1.msra.mxu0 0.0
    %585 = vmatprep.subr.mxu0 0.0
    %586 = vmatpush1.msra.mxu0 0.0
    %587 = vmatprep.subr.mxu0 0.0
    %588 = vmatpush1.msra.mxu0 0.0
    %589 = vmatprep.subr.mxu0 0.0
    %590 = vmatpush1.msra.mxu0 %v55
    %591 = vmatprep.subr.mxu0 0.0
    %592 = vmatpush1.msra.mxu0 %v54
    %593 = vmatprep.subr.mxu0 0.0
    %594 = vmatpush1.msra.mxu0 %v53
    %595 = vmatprep.subr.mxu0 0.0
    %596 = vmatpush1.msra.mxu0 %v52
    %597 = vmatprep.subr.mxu0 0.0
    %598 = vmatpush2.msra.mxu0 0.0
    %599 = vmatprep.subr.mxu0 0.0
    %600 = vmatpush2.msra.mxu0 0.0
    %601 = vmatprep.subr.mxu0 0.0
    %602 = vmatpush2.msra.mxu0 0.0
    %603 = vmatprep.subr.mxu0 0.0
    %604 = vmatpush2.msra.mxu0 0.0
    %605 = vmatprep.subr.mxu0 0.0
    %606 = vmatpush2.msra.mxu0 0.0
    %607 = vmatprep.subr.mxu0 0.0
    %608 = vmatpush2.msra.mxu0 0.0
    %609 = vmatprep.subr.mxu0 0.0
    %610 = vmatpush2.msra.mxu0 0.0
    %611 = vmatprep.subr.mxu0 0.0
    %612 = vmatpush2.msra.mxu0 0.0
    %613 = vmatprep.subr.mxu0 0.0
    %614 = vmatpush2.msra.mxu0 0.0
    %615 = vmatprep.subr.mxu0 0.0
    %616 = vmatpush2.msra.mxu0 0.0
    %617 = vmatprep.subr.mxu0 0.0
    %618 = vmatpush2.msra.mxu0 0.0
    %619 = vmatprep.subr.mxu0 0.0
    %620 = vmatpush2.msra.mxu0 0.0
    %621 = vmatprep.subr.mxu0 0.0
    %622 = vmatpush2.msra.mxu0 0.0
    %623 = vmatprep.subr.mxu0 0.0
    %624 = vmatpush2.msra.mxu0 0.0
    %625 = vmatprep.subr.mxu0 0.0
    %626 = vmatpush2.msra.mxu0 0.0
    %627 = vmatprep.subr.mxu0 0.0
    %628 = vmatpush2.msra.mxu0 0.0
    %629 = vmatprep.mubr.f32.mxu0 0.0
    %630 = vmatmul.mubr.f32.gmra.mxu0 %v563
    %v631 = vpop.f32.mrf.mxu0
    %v632 = vadd.f32 0.0, %v631
    %v633 = vpop.f32.mrf.mxu0
    %634 = vdwg.mxu0
    %v635 = vadd.f32 %v149, %v632
    %v636 = vtanh.pop %v635
    %v637 = vxor.u32 %v635, 2147483648
    %v638 = vmul.f32 %v637, 1.442695
    %v639 = vpow.pop %v638
    %v640 = vadd.f32 %v639, 1.0
    %v641 = vrcp.pop %v640
    %v642 = vmul.f32 1.0, %v641
    %644 = vrot.lane.b32.xlu0 %v642, 96
    %v645 = vpop.permute.xlu0 %644
    %v647 = vmul.f32 %v636, %v645
    %v648 = vrot.slane %v642, 2
    %649 = vrot.lane.b32.xlu0 %v648, 64
    %v650 = vpop.permute.xlu0 %649
    %v652 = vmul.f32 %v555, %v650
    %v654 = vrot.slane %v652, 6
    %v656 = vadd.f32 %v647, %v654
    %v657 = vtanh.pop %v656
    %658 = vrot.lane.b32.xlu0 %v642, 32
    %v659 = vpop.permute.xlu0 %658
    %v661 = vmul.f32 %v657, %v659
    %v663 = vsel %vm152, %v661, 0
    %665 = vmatprep.subr.mxu0 0.0
    %666 = vmatpush1.msra.mxu0 0.0
    %667 = vmatprep.subr.mxu0 0.0
    %668 = vmatpush1.msra.mxu0 0.0
    %669 = vmatprep.subr.mxu0 0.0
    %670 = vmatpush1.msra.mxu0 0.0
    %671 = vmatprep.subr.mxu0 0.0
    %672 = vmatpush1.msra.mxu0 0.0
    %673 = vmatprep.subr.mxu0 0.0
    %674 = vmatpush1.msra.mxu0 0.0
    %675 = vmatprep.subr.mxu0 0.0
    %676 = vmatpush1.msra.mxu0 0.0
    %677 = vmatprep.subr.mxu0 0.0
    %678 = vmatpush1.msra.mxu0 0.0
    %679 = vmatprep.subr.mxu0 0.0
    %680 = vmatpush1.msra.mxu0 0.0
    %681 = vmatprep.subr.mxu0 0.0
    %682 = vmatpush1.msra.mxu0 0.0
    %683 = vmatprep.subr.mxu0 0.0
    %684 = vmatpush1.msra.mxu0 0.0
    %685 = vmatprep.subr.mxu0 0.0
    %686 = vmatpush1.msra.mxu0 0.0
    %687 = vmatprep.subr.mxu0 0.0
    %688 = vmatpush1.msra.mxu0 0.0
    %689 = vmatprep.subr.mxu0 0.0
    %690 = vmatpush1.msra.mxu0 %v55
    %691 = vmatprep.subr.mxu0 0.0
    %692 = vmatpush1.msra.mxu0 %v54
    %693 = vmatprep.subr.mxu0 0.0
    %694 = vmatpush1.msra.mxu0 %v53
    %695 = vmatprep.subr.mxu0 0.0
    %696 = vmatpush1.msra.mxu0 %v52
    %697 = vmatprep.subr.mxu0 0.0
    %698 = vmatpush2.msra.mxu0 0.0
    %699 = vmatprep.subr.mxu0 0.0
    %700 = vmatpush2.msra.mxu0 0.0
    %701 = vmatprep.subr.mxu0 0.0
    %702 = vmatpush2.msra.mxu0 0.0
    %703 = vmatprep.subr.mxu0 0.0
    %704 = vmatpush2.msra.mxu0 0.0
    %705 = vmatprep.subr.mxu0 0.0
    %706 = vmatpush2.msra.mxu0 0.0
    %707 = vmatprep.subr.mxu0 0.0
    %708 = vmatpush2.msra.mxu0 0.0
    %709 = vmatprep.subr.mxu0 0.0
    %710 = vmatpush2.msra.mxu0 0.0
    %711 = vmatprep.subr.mxu0 0.0
    %712 = vmatpush2.msra.mxu0 0.0
    %713 = vmatprep.subr.mxu0 0.0
    %714 = vmatpush2.msra.mxu0 0.0
    %715 = vmatprep.subr.mxu0 0.0
    %716 = vmatpush2.msra.mxu0 0.0
    %717 = vmatprep.subr.mxu0 0.0
    %718 = vmatpush2.msra.mxu0 0.0
    %719 = vmatprep.subr.mxu0 0.0
    %720 = vmatpush2.msra.mxu0 0.0
    %721 = vmatprep.subr.mxu0 0.0
    %722 = vmatpush2.msra.mxu0 0.0
    %723 = vmatprep.subr.mxu0 0.0
    %724 = vmatpush2.msra.mxu0 0.0
    %725 = vmatprep.subr.mxu0 0.0
    %726 = vmatpush2.msra.mxu0 0.0
    %727 = vmatprep.subr.mxu0 0.0
    %728 = vmatpush2.msra.mxu0 0.0
    %729 = vmatprep.mubr.f32.mxu0 0.0
    %730 = vmatmul.mubr.f32.gmra.mxu0 %v663
    %v731 = vpop.f32.mrf.mxu0
    %v732 = vadd.f32 0.0, %v731
    %v733 = vpop.f32.mrf.mxu0
    %734 = vdwg.mxu0
    %v736 = vrot.slane %v732, 6
    %v738 = vadd.f32 %v149, %v736
    %v739 = vtanh.pop %v738
    %v740 = vxor.u32 %v738, 2147483648
    %v741 = vmul.f32 %v740, 1.442695
    %v742 = vpow.pop %v741
    %v743 = vadd.f32 %v742, 1.0
    %v744 = vrcp.pop %v743
    %v745 = vmul.f32 1.0, %v744
    %747 = vrot.lane.b32.xlu0 %v745, 96
    %v748 = vpop.permute.xlu0 %747
    %v750 = vmul.f32 %v739, %v748
    %v751 = vrot.slane %v745, 2
    %752 = vrot.lane.b32.xlu0 %v751, 64
    %v753 = vpop.permute.xlu0 %752
    %v755 = vmul.f32 %v656, %v753
    %v757 = vrot.slane %v755, 6
    %v759 = vadd.f32 %v750, %v757
    %v760 = vtanh.pop %v759
    %761 = vrot.lane.b32.xlu0 %v745, 32
    %v762 = vpop.permute.xlu0 %761
    %v764 = vmul.f32 %v760, %v762
    %v766 = vrot.slane %v764, 2
    %v767 = vsel %vm152, %v766, 0
    %769 = vmatprep.subr.mxu0 0.0
    %770 = vmatpush1.msra.mxu0 0.0
    %771 = vmatprep.subr.mxu0 0.0
    %772 = vmatpush1.msra.mxu0 0.0
    %773 = vmatprep.subr.mxu0 0.0
    %774 = vmatpush1.msra.mxu0 0.0
    %775 = vmatprep.subr.mxu0 0.0
    %776 = vmatpush1.msra.mxu0 0.0
    %777 = vmatprep.subr.mxu0 0.0
    %778 = vmatpush1.msra.mxu0 0.0
    %779 = vmatprep.subr.mxu0 0.0
    %780 = vmatpush1.msra.mxu0 0.0
    %781 = vmatprep.subr.mxu0 0.0
    %782 = vmatpush1.msra.mxu0 0.0
    %783 = vmatprep.subr.mxu0 0.0
    %784 = vmatpush1.msra.mxu0 0.0
    %785 = vmatprep.subr.mxu0 0.0
    %786 = vmatpush1.msra.mxu0 0.0
    %787 = vmatprep.subr.mxu0 0.0
    %788 = vmatpush1.msra.mxu0 0.0
    %789 = vmatprep.subr.mxu0 0.0
    %790 = vmatpush1.msra.mxu0 0.0
    %791 = vmatprep.subr.mxu0 0.0
    %792 = vmatpush1.msra.mxu0 0.0
    %793 = vmatprep.subr.mxu0 0.0
    %794 = vmatpush1.msra.mxu0 %v55
    %795 = vmatprep.subr.mxu0 0.0
    %796 = vmatpush1.msra.mxu0 %v54
    %797 = vmatprep.subr.mxu0 0.0
    %798 = vmatpush1.msra.mxu0 %v53
    %799 = vmatprep.subr.mxu0 0.0
    %800 = vmatpush1.msra.mxu0 %v52
    %801 = vmatprep.subr.mxu0 0.0
    %802 = vmatpush2.msra.mxu0 0.0
    %803 = vmatprep.subr.mxu0 0.0
    %804 = vmatpush2.msra.mxu0 0.0
    %805 = vmatprep.subr.mxu0 0.0
    %806 = vmatpush2.msra.mxu0 0.0
    %807 = vmatprep.subr.mxu0 0.0
    %808 = vmatpush2.msra.mxu0 0.0
    %809 = vmatprep.subr.mxu0 0.0
    %810 = vmatpush2.msra.mxu0 0.0
    %811 = vmatprep.subr.mxu0 0.0
    %812 = vmatpush2.msra.mxu0 0.0
    %813 = vmatprep.subr.mxu0 0.0
    %814 = vmatpush2.msra.mxu0 0.0
    %815 = vmatprep.subr.mxu0 0.0
    %816 = vmatpush2.msra.mxu0 0.0
    %817 = vmatprep.subr.mxu0 0.0
    %818 = vmatpush2.msra.mxu0 0.0
    %819 = vmatprep.subr.mxu0 0.0
    %820 = vmatpush2.msra.mxu0 0.0
    %821 = vmatprep.subr.mxu0 0.0
    %822 = vmatpush2.msra.mxu0 0.0
    %823 = vmatprep.subr.mxu0 0.0
    %824 = vmatpush2.msra.mxu0 0.0
    %825 = vmatprep.subr.mxu0 0.0
    %826 = vmatpush2.msra.mxu0 0.0
    %827 = vmatprep.subr.mxu0 0.0
    %828 = vmatpush2.msra.mxu0 0.0
    %829 = vmatprep.subr.mxu0 0.0
    %830 = vmatpush2.msra.mxu0 0.0
    %831 = vmatprep.subr.mxu0 0.0
    %832 = vmatpush2.msra.mxu0 0.0
    %833 = vmatprep.mubr.f32.mxu0 0.0
    %834 = vmatmul.mubr.f32.gmra.mxu0 %v767
    %v835 = vpop.f32.mrf.mxu0
    %v836 = vadd.f32 0.0, %v835
    %v837 = vpop.f32.mrf.mxu0
    %838 = vdwg.mxu0
    %v840 = vrot.slane %v836, 4
    %v842 = vadd.f32 %v149, %v840
    %v843 = vtanh.pop %v842
    %v844 = vxor.u32 %v842, 2147483648
    %v845 = vmul.f32 %v844, 1.442695
    %v846 = vpow.pop %v845
    %v847 = vadd.f32 %v846, 1.0
    %v848 = vrcp.pop %v847
    %v849 = vmul.f32 1.0, %v848
    %851 = vrot.lane.b32.xlu0 %v849, 96
    %v852 = vpop.permute.xlu0 %851
    %v854 = vmul.f32 %v843, %v852
    %v855 = vrot.slane %v849, 2
    %856 = vrot.lane.b32.xlu0 %v855, 64
    %v857 = vpop.permute.xlu0 %856
    %v859 = vmul.f32 %v759, %v857
    %v861 = vrot.slane %v859, 6
    %v863 = vadd.f32 %v854, %v861
    %v864 = vtanh.pop %v863
    %865 = vrot.lane.b32.xlu0 %v849, 32
    %v866 = vpop.permute.xlu0 %865
    %v868 = vmul.f32 %v864, %v866
    %v870 = vrot.slane %v868, 4
    %v871 = vsel %vm152, %v870, 0
    %873 = vmatprep.subr.mxu0 0.0
    %874 = vmatpush1.msra.mxu0 0.0
    %875 = vmatprep.subr.mxu0 0.0
    %876 = vmatpush1.msra.mxu0 0.0
    %877 = vmatprep.subr.mxu0 0.0
    %878 = vmatpush1.msra.mxu0 0.0
    %879 = vmatprep.subr.mxu0 0.0
    %880 = vmatpush1.msra.mxu0 0.0
    %881 = vmatprep.subr.mxu0 0.0
    %882 = vmatpush1.msra.mxu0 0.0
    %883 = vmatprep.subr.mxu0 0.0
    %884 = vmatpush1.msra.mxu0 0.0
    %885 = vmatprep.subr.mxu0 0.0
    %886 = vmatpush1.msra.mxu0 0.0
    %887 = vmatprep.subr.mxu0 0.0
    %888 = vmatpush1.msra.mxu0 0.0
    %889 = vmatprep.subr.mxu0 0.0
    %890 = vmatpush1.msra.mxu0 0.0
    %891 = vmatprep.subr.mxu0 0.0
    %892 = vmatpush1.msra.mxu0 0.0
    %893 = vmatprep.subr.mxu0 0.0
    %894 = vmatpush1.msra.mxu0 0.0
    %895 = vmatprep.subr.mxu0 0.0
    %896 = vmatpush1.msra.mxu0 0.0
    %897 = vmatprep.subr.mxu0 0.0
    %898 = vmatpush1.msra.mxu0 %v55
    %899 = vmatprep.subr.mxu0 0.0
    %900 = vmatpush1.msra.mxu0 %v54
    %901 = vmatprep.subr.mxu0 0.0
    %902 = vmatpush1.msra.mxu0 %v53
    %903 = vmatprep.subr.mxu0 0.0
    %904 = vmatpush1.msra.mxu0 %v52
    %905 = vmatprep.subr.mxu0 0.0
    %906 = vmatpush2.msra.mxu0 0.0
    %907 = vmatprep.subr.mxu0 0.0
    %908 = vmatpush2.msra.mxu0 0.0
    %909 = vmatprep.subr.mxu0 0.0
    %910 = vmatpush2.msra.mxu0 0.0
    %911 = vmatprep.subr.mxu0 0.0
    %912 = vmatpush2.msra.mxu0 0.0
    %913 = vmatprep.subr.mxu0 0.0
    %914 = vmatpush2.msra.mxu0 0.0
    %915 = vmatprep.subr.mxu0 0.0
    %916 = vmatpush2.msra.mxu0 0.0
    %917 = vmatprep.subr.mxu0 0.0
    %918 = vmatpush2.msra.mxu0 0.0
    %919 = vmatprep.subr.mxu0 0.0
    %920 = vmatpush2.msra.mxu0 0.0
    %921 = vmatprep.subr.mxu0 0.0
    %922 = vmatpush2.msra.mxu0 0.0
    %923 = vmatprep.subr.mxu0 0.0
    %924 = vmatpush2.msra.mxu0 0.0
    %925 = vmatprep.subr.mxu0 0.0
    %926 = vmatpush2.msra.mxu0 0.0
    %927 = vmatprep.subr.mxu0 0.0
    %928 = vmatpush2.msra.mxu0 0.0
    %929 = vmatprep.subr.mxu0 0.0
    %930 = vmatpush2.msra.mxu0 0.0
    %931 = vmatprep.subr.mxu0 0.0
    %932 = vmatpush2.msra.mxu0 0.0
    %933 = vmatprep.subr.mxu0 0.0
    %934 = vmatpush2.msra.mxu0 0.0
    %935 = vmatprep.subr.mxu0 0.0
    %936 = vmatpush2.msra.mxu0 0.0
    %937 = vmatprep.mubr.f32.mxu0 0.0
    %938 = vmatmul.mubr.f32.gmra.mxu0 %v871
    %v939 = vpop.f32.mrf.mxu0
    %v940 = vadd.f32 0.0, %v939
    %v941 = vpop.f32.mrf.mxu0
    %942 = vdwg.mxu0
    %v944 = vrot.slane %v940, 2
    %v946 = vadd.f32 %v149, %v944
    %v947 = vtanh.pop %v946
    %v948 = vxor.u32 %v946, 2147483648
    %v949 = vmul.f32 %v948, 1.442695
    %v950 = vpow.pop %v949
    %v951 = vadd.f32 %v950, 1.0
    %v952 = vrcp.pop %v951
    %v953 = vmul.f32 1.0, %v952
    %955 = vrot.lane.b32.xlu0 %v953, 96
    %v956 = vpop.permute.xlu0 %955
    %v958 = vmul.f32 %v947, %v956
    %v959 = vrot.slane %v953, 2
    %960 = vrot.lane.b32.xlu0 %v959, 64
    %v961 = vpop.permute.xlu0 %960
    %v963 = vmul.f32 %v863, %v961
    %v965 = vrot.slane %v963, 6
    %v967 = vadd.f32 %v958, %v965
    %v968 = vtanh.pop %v967
    %969 = vrot.lane.b32.xlu0 %v953, 32
    %v970 = vpop.permute.xlu0 %969
    %v972 = vmul.f32 %v968, %v970
    %v973 = vld [vmem:[#allocation5] sm:$0xff]
    %v974 = vld [vmem:[#allocation5 + $0x8] sm:$0xff]
    %v975 = vld [vmem:[#allocation5 + $0x10] sm:$0xff]
    %v976 = vld [vmem:[#allocation5 + $0x18] sm:$0xff]
    %v977 = vld [vmem:[%s5] sm:$0x1]
    %v979 = vlaneseq
    %v980 = vshrl.u32 %v979, 7
    %v981 = vsub.s32 0, %v980
    %v982 = vrot.slane %v977, %v981
    %v985 = vrot.slane %v972, 6
    %v986 = vsel %vm152, %v985, 0
    %988 = vmatprep.subr.mxu0 0.0
    %989 = vmatpush1.msra.mxu0 0.0
    %990 = vmatprep.subr.mxu0 0.0
    %991 = vmatpush1.msra.mxu0 0.0
    %992 = vmatprep.subr.mxu0 0.0
    %993 = vmatpush1.msra.mxu0 0.0
    %994 = vmatprep.subr.mxu0 0.0
    %995 = vmatpush1.msra.mxu0 0.0
    %996 = vmatprep.subr.mxu0 0.0
    %997 = vmatpush1.msra.mxu0 0.0
    %998 = vmatprep.subr.mxu0 0.0
    %999 = vmatpush1.msra.mxu0 0.0
    %1000 = vmatprep.subr.mxu0 0.0
    %1001 = vmatpush1.msra.mxu0 0.0
    %1002 = vmatprep.subr.mxu0 0.0
    %1003 = vmatpush1.msra.mxu0 0.0
    %1004 = vmatprep.subr.mxu0 0.0
    %1005 = vmatpush1.msra.mxu0 0.0
    %1006 = vmatprep.subr.mxu0 0.0
    %1007 = vmatpush1.msra.mxu0 0.0
    %1008 = vmatprep.subr.mxu0 0.0
    %1009 = vmatpush1.msra.mxu0 0.0
    %1010 = vmatprep.subr.mxu0 0.0
    %1011 = vmatpush1.msra.mxu0 0.0
    %1012 = vmatprep.subr.mxu0 0.0
    %1013 = vmatpush1.msra.mxu0 %v976
    %1014 = vmatprep.subr.mxu0 0.0
    %1015 = vmatpush1.msra.mxu0 %v975
    %1016 = vmatprep.subr.mxu0 0.0
    %1017 = vmatpush1.msra.mxu0 %v974
    %1018 = vmatprep.subr.mxu0 0.0
    %1019 = vmatpush1.msra.mxu0 %v973
    %1020 = vmatprep.subr.mxu0 0.0
    %1021 = vmatpush2.msra.mxu0 0.0
    %1022 = vmatprep.subr.mxu0 0.0
    %1023 = vmatpush2.msra.mxu0 0.0
    %1024 = vmatprep.subr.mxu0 0.0
    %1025 = vmatpush2.msra.mxu0 0.0
    %1026 = vmatprep.subr.mxu0 0.0
    %1027 = vmatpush2.msra.mxu0 0.0
    %1028 = vmatprep.subr.mxu0 0.0
    %1029 = vmatpush2.msra.mxu0 0.0
    %1030 = vmatprep.subr.mxu0 0.0
    %1031 = vmatpush2.msra.mxu0 0.0
    %1032 = vmatprep.subr.mxu0 0.0
    %1033 = vmatpush2.msra.mxu0 0.0
    %1034 = vmatprep.subr.mxu0 0.0
    %1035 = vmatpush2.msra.mxu0 0.0
    %1036 = vmatprep.subr.mxu0 0.0
    %1037 = vmatpush2.msra.mxu0 0.0
    %1038 = vmatprep.subr.mxu0 0.0
    %1039 = vmatpush2.msra.mxu0 0.0
    %1040 = vmatprep.subr.mxu0 0.0
    %1041 = vmatpush2.msra.mxu0 0.0
    %1042 = vmatprep.subr.mxu0 0.0
    %1043 = vmatpush2.msra.mxu0 0.0
    %1044 = vmatprep.subr.mxu0 0.0
    %1045 = vmatpush2.msra.mxu0 0.0
    %1046 = vmatprep.subr.mxu0 0.0
    %1047 = vmatpush2.msra.mxu0 0.0
    %1048 = vmatprep.subr.mxu0 0.0
    %1049 = vmatpush2.msra.mxu0 0.0
    %1050 = vmatprep.subr.mxu0 0.0
    %1051 = vmatpush2.msra.mxu0 0.0
    %1052 = vmatprep.mubr.f32.mxu0 0.0
    %1053 = vmatmul.mubr.f32.gmra.mxu0 %v986
    %v1054 = vpop.f32.mrf.mxu0
    %v1055 = vadd.f32 %v982, %v1054
    %v1056 = vpop.f32.mrf.mxu0
    %1057 = vdwg.mxu0
    %1058 = vst [vmem:[#allocation7] sm:$0x3] %v1055
    // Predicated region
    $region34: #{tpu_custom_call.1} parent=1 // pred_check
      _
    $region35: #{tpu_custom_call.1} parent=1 // pred_check_branch
      %1060 = sbr.rel (0) target = $region37
    $region36: #{tpu_custom_call.1} parent=1 // pred_region
      %s1062 = ssub.s32 32, 32
      %1063 = vsyncadd [#allocation4], %s1062
      %s1065 = sshll.u32 [#allocation7], 4
      %s1066 = int_to_ptr.vmem [resolvable:$true] %s1065
      %1068 = dma.vmem_to_hbm [thread:$0]  %s1066, 32, %s6, [#allocation4]
    $region37: #{tpu_custom_call.1} parent=1 // pred_fallthru
      _
    // Predicated region
    $region38: #{tpu_custom_call.1} parent=1 // pred_check
      _
    $region39: #{tpu_custom_call.1} parent=1 // pred_check_branch
      %1070 = sbr.rel (0) target = $region41
    $region40: #{tpu_custom_call.1} parent=1 // pred_region
      %1071 = dma.done [#allocation4], 32
    $region41: #{tpu_custom_call.1} parent=1 // pred_fallthru
      _
    %1072 = vsyncpa [#allocation3], 1
    %1073 = vsyncpa [#allocation6], 1
    %1074 = vsyncpa [#allocation4], 1

</llo_original>
